<compile_context>
chip_gen: v6e
topology: v6e:2x2x1
jax: 0.10.0
libtpu: 0.0.40
codegen_flags: <defaults>
</compile_context>

<pallas_src>
import jax
import jax.numpy as jnp
from jax.experimental import pallas as pl
from jax.experimental.pallas import tpu as pltpu


def _round_up(x, m):
    return ((x + m - 1) // m) * m


def _cdiv(a, b):
    return -(-a // b)


def _linear_decoder_kernel(z_ref, w1_ref, b1_ref, w2_ref, b2_ref,
                           w3_ref, b3_ref, o_ref):
    # Layer 1: latent -> hidden[1], ReLU. z is already bf16; f32 accumulate.
    h = jnp.dot(z_ref[...], w1_ref[...], preferred_element_type=jnp.float32)
    h = jnp.maximum(h + b1_ref[...], 0.0)
    # Layer 2: hidden[1] -> hidden[0], ReLU
    h = jnp.dot(h.astype(jnp.bfloat16), w2_ref[...],
                preferred_element_type=jnp.float32)
    h = jnp.maximum(h + b2_ref[...], 0.0)
    # Layer 3: hidden[0] -> input_size, Sigmoid
    y = jnp.dot(h.astype(jnp.bfloat16), w3_ref[...],
                preferred_element_type=jnp.float32)
    y = y + b3_ref[...]
    # sigmoid(y) = 0.5 * tanh(0.5 * y) + 0.5  (single EUP op, no inf intermediate)
    o_ref[...] = (0.5 * jnp.tanh(0.5 * y) + 0.5).astype(o_ref.dtype)


def _choose_tiling(B, tb_max, min_grid_steps):
    """Pick (TB, B_pad, n_tiles) minimizing padding while keeping tiles large.

    Keeps >= min_grid_steps grid steps when B is large enough that each step
    still gets at least 256 rows (so v7x's 2 TensorCores both do work).
    """
    n_tiles = max(_cdiv(B, tb_max), 1)
    if n_tiles < min_grid_steps and B >= min_grid_steps * 256:
        n_tiles = min_grid_steps
    TB = _round_up(_cdiv(B, n_tiles), 8)   # <=7 padded rows per tile
    B_pad = n_tiles * TB
    return TB, B_pad, n_tiles


def linear_decoder_forward(z, params, *, tb_max=1024, min_grid_steps=2,
                           out_dtype=jnp.float32):
    """z: [B, latent_size] float. params: dict of (w, b) per layer, w [in, out] bf16."""
    w1, b1 = params["latent2hidden"]
    w2, b2 = params["fc5"]
    w3, b3 = params["fc6"]

    B, latent = z.shape
    h1 = w1.shape[1]
    h0 = w2.shape[1]
    out_dim = w3.shape[1]

    TB, B_pad, n_tiles = _choose_tiling(B, tb_max, min_grid_steps)

    # Cast z once in the wrapper (halves its HBM read, feeds the MXU directly).
    z_bf = z.astype(jnp.bfloat16)
    if B_pad != B:
        z_bf = jnp.pad(z_bf, ((0, B_pad - B), (0, 0)))
    grid = (n_tiles,)

    tiled = lambda shape: pl.BlockSpec(shape, lambda i: (i, 0))     # z / out tiles
    resident = lambda shape: pl.BlockSpec(shape, lambda i: (0, 0))  # weights/biases

    flops = 2 * B_pad * (latent * h1 + h1 * h0 + h0 * out_dim)
    bytes_accessed = (
        z_bf.size * z_bf.dtype.itemsize
        + sum(a.size * a.dtype.itemsize for a in (w1, b1, w2, b2, w3, b3))
        + B_pad * out_dim * jnp.dtype(out_dtype).itemsize
    )
    transcendentals = B_pad * out_dim  # one tanh per output element

    out = pl.pallas_call(
        _linear_decoder_kernel,
        out_shape=jax.ShapeDtypeStruct((B_pad, out_dim), out_dtype),
        grid=grid,
        in_specs=[
            tiled((TB, latent)),
            resident(w1.shape), resident(b1.shape),
            resident(w2.shape), resident(b2.shape),
            resident(w3.shape), resident(b3.shape),
        ],
        out_specs=tiled((TB, out_dim)),
        compiler_params=pltpu.CompilerParams(
            dimension_semantics=("parallel",)),
        cost_estimate=pl.CostEstimate(
            flops=flops,
            bytes_accessed=bytes_accessed,
            transcendentals=transcendentals),
    )(z_bf, w1, b1, w2, b2, w3, b3)

    return out[:B] if B_pad != B else out


def init_params(key, latent_size, hidden_sizes, input_size):
    """Deterministic PyTorch-style uniform init. Weights [in, out] bf16, biases f32."""
    dims = [
        (latent_size, hidden_sizes[1]),       # latent2hidden
        (hidden_sizes[1], hidden_sizes[0]),   # fc5
        (hidden_sizes[0], input_size),        # fc6
    ]
    names = ["latent2hidden", "fc5", "fc6"]
    params = {}
    for name, (fan_in, fan_out) in zip(names, dims):
        key, kw, kb = jax.random.split(key, 3)
        bound = 1.0 / jnp.sqrt(fan_in)
        w = jax.random.uniform(kw, (fan_in, fan_out), jnp.float32, -bound, bound)
        b = jax.random.uniform(kb, (1, fan_out), jnp.float32, -bound, bound)
        params[name] = (w.astype(jnp.bfloat16), b)
    return params


def reference_forward(z, params):
    """Pure-JAX reference using the same bf16-weight / f32-accumulate math."""
    w1, b1 = params["latent2hidden"]
    w2, b2 = params["fc5"]
    w3, b3 = params["fc6"]
    h = jnp.dot(z.astype(jnp.bfloat16), w1, preferred_element_type=jnp.float32) + b1
    h = jax.nn.relu(h)
    h = jnp.dot(h.astype(jnp.bfloat16), w2, preferred_element_type=jnp.float32) + b2
    h = jax.nn.relu(h)
    y = jnp.dot(h.astype(jnp.bfloat16), w3, preferred_element_type=jnp.float32) + b3
    return jax.nn.sigmoid(y)


if __name__ == "__main__":
    # argdict-equivalent (small, TPU-friendly shapes)
    latent_size = 16
    hidden_size_encoder = [64, 32]   # [hidden[0], hidden[1]]
    input_size = 128                 # lane-dense output (multiple of 128)
    # NOTE: bf16 weights / bf16 intermediate casts are an intentional precision
    # tradeoff vs the pure-f32 PyTorch module (documented per review).

    key = jax.random.PRNGKey(0)
    params = init_params(key, latent_size, hidden_size_encoder, input_size)

    # Check 1: small batch (single grid step)
    key, kz = jax.random.split(key)
    batch = 32
    z = jax.random.normal(kz, (batch, latent_size), jnp.float32)
    out = jax.block_until_ready(linear_decoder_forward(z, params))
    ref = reference_forward(z, params)
    assert out.shape == (batch, input_size)
    assert jnp.allclose(out, ref, atol=2e-3, rtol=2e-3), float(
        jnp.max(jnp.abs(out - ref)))

    # Check 2: ragged batch exercising low-waste padding + multi-step grid
    key, kz2 = jax.random.split(key)
    batch2 = 300
    z2 = jax.random.normal(kz2, (batch2, latent_size), jnp.float32)
    out2 = jax.block_until_ready(
        linear_decoder_forward(z2, params, tb_max=128))
    ref2 = reference_forward(z2, params)
    assert out2.shape == (batch2, input_size)
    assert jnp.allclose(out2, ref2, atol=2e-3, rtol=2e-3), float(
        jnp.max(jnp.abs(out2 - ref2)))

    print("KERNEL_OK")
</pallas_src>

<mosaic_0001>
module attributes {stable_mosaic.version = 11 : i64} {
  func.func @_linear_decoder_kernel(%arg0: i32, %arg1: memref<32x16xbf16, #tpu.memory_space<vmem>>, %arg2: memref<16x32xbf16, #tpu.memory_space<vmem>>, %arg3: memref<1x32xf32, #tpu.memory_space<vmem>>, %arg4: memref<32x64xbf16, #tpu.memory_space<vmem>>, %arg5: memref<1x64xf32, #tpu.memory_space<vmem>>, %arg6: memref<64x128xbf16, #tpu.memory_space<vmem>>, %arg7: memref<1x128xf32, #tpu.memory_space<vmem>>, %arg8: memref<32x128xf32, #tpu.memory_space<vmem>>) attributes {dimension_semantics = [#tpu.dimension_semantics<parallel>], iteration_bounds = array<i64: 1>, scalar_prefetch = 0 : i64, scratch_operands = 0 : i64, tpu.core_type = #tpu.core_type<tc>, window_params = [{transform_indices = @transform_0, window_bounds = array<i64: 32, 16>}, {pipeline_mode = #tpu.pipeline_mode<synchronous>, transform_indices = @transform_1, window_bounds = array<i64: 16, 32>}, {pipeline_mode = #tpu.pipeline_mode<synchronous>, transform_indices = @transform_2, window_bounds = array<i64: 1, 32>}, {pipeline_mode = #tpu.pipeline_mode<synchronous>, transform_indices = @transform_3, window_bounds = array<i64: 32, 64>}, {pipeline_mode = #tpu.pipeline_mode<synchronous>, transform_indices = @transform_4, window_bounds = array<i64: 1, 64>}, {pipeline_mode = #tpu.pipeline_mode<synchronous>, transform_indices = @transform_5, window_bounds = array<i64: 64, 128>}, {pipeline_mode = #tpu.pipeline_mode<synchronous>, transform_indices = @transform_6, window_bounds = array<i64: 1, 128>}, {transform_indices = @transform_7, window_bounds = array<i64: 32, 128>}]} {
    %c0 = arith.constant 0 : index
    %c0_0 = arith.constant 0 : index
    %0 = vector.load %arg1[%c0, %c0_0] : memref<32x16xbf16, #tpu.memory_space<vmem>>, vector<32x16xbf16>
    %c0_1 = arith.constant 0 : index
    %c0_2 = arith.constant 0 : index
    %1 = vector.load %arg2[%c0_1, %c0_2] : memref<16x32xbf16, #tpu.memory_space<vmem>>, vector<16x32xbf16>
    %cst = arith.constant dense<0.000000e+00> : vector<32x32xf32>
    %2 = tpu.matmul %0, %1, %cst {dimension_numbers = #tpu.dot_dimension_numbers<[1], [0], [0], [1], [0, 0, 1, 1], [], []>} : vector<32x16xbf16>, vector<16x32xbf16>, vector<32x32xf32> -> vector<32x32xf32>
    %c0_3 = arith.constant 0 : index
    %c0_4 = arith.constant 0 : index
    %3 = vector.load %arg3[%c0_3, %c0_4] : memref<1x32xf32, #tpu.memory_space<vmem>>, vector<1x32xf32>
    %4 = vector.broadcast %3 : vector<1x32xf32> to vector<32x32xf32>
    %5 = arith.addf %2, %4 : vector<32x32xf32>
    %cst_5 = arith.constant 0.000000e+00 : f32
    %6 = vector.broadcast %cst_5 : f32 to vector<32x32xf32>
    %7 = arith.maximumf %5, %6 : vector<32x32xf32>
    %8 = arith.truncf %7 : vector<32x32xf32> to vector<32x32xbf16>
    %c0_6 = arith.constant 0 : index
    %c0_7 = arith.constant 0 : index
    %9 = vector.load %arg4[%c0_6, %c0_7] : memref<32x64xbf16, #tpu.memory_space<vmem>>, vector<32x64xbf16>
    %cst_8 = arith.constant dense<0.000000e+00> : vector<32x64xf32>
    %10 = tpu.matmul %8, %9, %cst_8 {dimension_numbers = #tpu.dot_dimension_numbers<[1], [0], [0], [1], [0, 0, 1, 1], [], []>} : vector<32x32xbf16>, vector<32x64xbf16>, vector<32x64xf32> -> vector<32x64xf32>
    %c0_9 = arith.constant 0 : index
    %c0_10 = arith.constant 0 : index
    %11 = vector.load %arg5[%c0_9, %c0_10] : memref<1x64xf32, #tpu.memory_space<vmem>>, vector<1x64xf32>
    %12 = vector.broadcast %11 : vector<1x64xf32> to vector<32x64xf32>
    %13 = arith.addf %10, %12 : vector<32x64xf32>
    %cst_11 = arith.constant 0.000000e+00 : f32
    %14 = vector.broadcast %cst_11 : f32 to vector<32x64xf32>
    %15 = arith.maximumf %13, %14 : vector<32x64xf32>
    %16 = arith.truncf %15 : vector<32x64xf32> to vector<32x64xbf16>
    %c0_12 = arith.constant 0 : index
    %c0_13 = arith.constant 0 : index
    %17 = vector.load %arg6[%c0_12, %c0_13] : memref<64x128xbf16, #tpu.memory_space<vmem>>, vector<64x128xbf16>
    %cst_14 = arith.constant dense<0.000000e+00> : vector<32x128xf32>
    %18 = tpu.matmul %16, %17, %cst_14 {dimension_numbers = #tpu.dot_dimension_numbers<[1], [0], [0], [1], [0, 0, 1, 1], [], []>} : vector<32x64xbf16>, vector<64x128xbf16>, vector<32x128xf32> -> vector<32x128xf32>
    %c0_15 = arith.constant 0 : index
    %c0_16 = arith.constant 0 : index
    %19 = vector.load %arg7[%c0_15, %c0_16] : memref<1x128xf32, #tpu.memory_space<vmem>>, vector<1x128xf32>
    %20 = vector.broadcast %19 : vector<1x128xf32> to vector<32x128xf32>
    %21 = arith.addf %18, %20 : vector<32x128xf32>
    %cst_17 = arith.constant 5.000000e-01 : f32
    %22 = vector.broadcast %cst_17 : f32 to vector<32x128xf32>
    %23 = arith.mulf %22, %21 : vector<32x128xf32>
    %24 = math.tanh %23 : vector<32x128xf32>
    %cst_18 = arith.constant 5.000000e-01 : f32
    %25 = vector.broadcast %cst_18 : f32 to vector<32x128xf32>
    %26 = arith.mulf %25, %24 : vector<32x128xf32>
    %cst_19 = arith.constant 5.000000e-01 : f32
    %27 = vector.broadcast %cst_19 : f32 to vector<32x128xf32>
    %28 = arith.addf %26, %27 : vector<32x128xf32>
    %c0_20 = arith.constant 0 : index
    %c0_21 = arith.constant 0 : index
    %29 = vector.load %arg8[%c0_20, %c0_21] : memref<32x128xf32, #tpu.memory_space<vmem>>, vector<32x128xf32>
    tpu.vector_store %arg8[%c0_20, %c0_21], %28 {strides = array<i32>} : memref<32x128xf32, #tpu.memory_space<vmem>>, vector<32x128xf32>,
    return
  }
  func.func @transform_0(%arg0: i32) -> (i32, i32) {
    %c0_i32 = arith.constant 0 : i32
    %c0_i32_0 = arith.constant 0 : i32
    return %arg0, %c0_i32 : i32, i32
  }
  func.func @transform_1(%arg0: i32) -> (i32, i32) {
    %c0_i32 = arith.constant 0 : i32
    %c0_i32_0 = arith.constant 0 : i32
    %c0_i32_1 = arith.constant 0 : i32
    return %c0_i32, %c0_i32_0 : i32, i32
  }
  func.func @transform_2(%arg0: i32) -> (i32, i32) {
    %c0_i32 = arith.constant 0 : i32
    %c0_i32_0 = arith.constant 0 : i32
    %c0_i32_1 = arith.constant 0 : i32
    return %c0_i32, %c0_i32_0 : i32, i32
  }
  func.func @transform_3(%arg0: i32) -> (i32, i32) {
    %c0_i32 = arith.constant 0 : i32
    %c0_i32_0 = arith.constant 0 : i32
    %c0_i32_1 = arith.constant 0 : i32
    return %c0_i32, %c0_i32_0 : i32, i32
  }
  func.func @transform_4(%arg0: i32) -> (i32, i32) {
    %c0_i32 = arith.constant 0 : i32
    %c0_i32_0 = arith.constant 0 : i32
    %c0_i32_1 = arith.constant 0 : i32
    return %c0_i32, %c0_i32_0 : i32, i32
  }
  func.func @transform_5(%arg0: i32) -> (i32, i32) {
    %c0_i32 = arith.constant 0 : i32
    %c0_i32_0 = arith.constant 0 : i32
    %c0_i32_1 = arith.constant 0 : i32
    return %c0_i32, %c0_i32_0 : i32, i32
  }
  func.func @transform_6(%arg0: i32) -> (i32, i32) {
    %c0_i32 = arith.constant 0 : i32
    %c0_i32_0 = arith.constant 0 : i32
    %c0_i32_1 = arith.constant 0 : i32
    return %c0_i32, %c0_i32_0 : i32, i32
  }
  func.func @transform_7(%arg0: i32) -> (i32, i32) {
    %c0_i32 = arith.constant 0 : i32
    %c0_i32_0 = arith.constant 0 : i32
    return %arg0, %c0_i32 : i32, i32
  }
}

</mosaic_0001>

<llo_original>
// kernel: tpu_custom_call.1
$region0: #{tpu_custom_call.1}
  #allocation0 [shape = 'u32[]', space=smem, size = 0x4, offset = 0x4, fixed_abs, tag = 'smem constant byte address 0x4 - core index']
  #allocation1 [shape = 'u32[144,128]{1,0:T(1,128)}', space=vmem, size = 0x12000, scoped, tag = 'internal scratch']
  %s0 = inlined_call_operand.vmem [shape: bf16[32,16], index: 0, kind: input, shape index: {}]
  %s1 = inlined_call_operand.hbm [shape: bf16[16,32], index: 1, kind: input, shape index: {}]
  %s2 = inlined_call_operand.vmem [shape: f32[1,32], index: 2, kind: input, shape index: {}]
  %s3 = inlined_call_operand.hbm [shape: bf16[32,64], index: 3, kind: input, shape index: {}]
  %s4 = inlined_call_operand.hbm [shape: f32[1,64], index: 4, kind: input, shape index: {}]
  %s5 = inlined_call_operand.vmem [shape: bf16[64,128], index: 5, kind: input, shape index: {}]
  %s6 = inlined_call_operand.vmem [shape: f32[1,128], index: 6, kind: input, shape index: {}]
  %s7 = inlined_call_operand.hbm [shape: f32[32,128], index: 7, kind: output, shape index: {}]
  %s8 = sld [smem:[#allocation0]]
  $region50: #{tpu_custom_call.1} parent=0
    _
  %s10 = ssub.s32 1, %s8
  %s11 = scalar_select 0, %s10, %s8
  $region1: #{tpu_custom_call.1} parent=0
    #allocation2 [shape = 'u8[4096]{0}', space=vmem, size = 0x1000, scoped, tag = 'input window, operand 1, single buffered']
    #allocation3 [shape = 's32[1]{0}', space=sflag, size = 0x4, scoped, tag = 'scoped memory for tpu_custom_call.1']
    #allocation4 [shape = 's32[1]{0}', space=sflag, size = 0x4, scoped, tag = 'scoped memory for tpu_custom_call.1']
    #allocation5 [shape = 'u8[8192]{0}', space=vmem, size = 0x2000, scoped, tag = 'input window, operand 3, single buffered']
    #allocation6 [shape = 's32[1]{0}', space=sflag, size = 0x4, scoped, tag = 'scoped memory for tpu_custom_call.1']
    #allocation7 [shape = 'u8[512]{0}', space=vmem, size = 0x400, scoped, tag = 'input window, operand 4, single buffered']
    #allocation8 [shape = 'u8[16384]{0}', space=vmem, size = 0x4000, scoped, tag = 'output window, operand 0, single buffered']
    %12 = vsyncpa [#allocation3], 0
    %13 = vsyncpa [#allocation6], 0
    %14 = vsyncpa [#allocation4], 0
    // Predicated region
    $region2: #{tpu_custom_call.1} parent=1 // pred_check
      _
    $region3: #{tpu_custom_call.1} parent=1 // pred_check_branch
      %16 = sbr.rel (0) target = $region5
    $region4: #{tpu_custom_call.1} parent=1 // pred_region
      _
    $region5: #{tpu_custom_call.1} parent=1 // pred_fallthru
      _
    // Predicated region
    $region6: #{tpu_custom_call.1} parent=1 // pred_check
      _
    $region7: #{tpu_custom_call.1} parent=1 // pred_check_branch
      %18 = sbr.rel (0) target = $region9
    $region8: #{tpu_custom_call.1} parent=1 // pred_region
      %s20 = ssub.s32 128, 128
      %21 = vsyncadd [#allocation3], %s20
      %s22 = sshll.u32 [#allocation2], 4
      %s23 = int_to_ptr.vmem [resolvable:$true] %s22
      %28 = dma.hbm_to_vmem [thread:$0]  %s1, 128, %s23, [#allocation3], 64, 64, 4
    $region9: #{tpu_custom_call.1} parent=1 // pred_fallthru
      _
    // Predicated region
    $region10: #{tpu_custom_call.1} parent=1 // pred_check
      _
    $region11: #{tpu_custom_call.1} parent=1 // pred_check_branch
      %30 = sbr.rel (0) target = $region13
    $region12: #{tpu_custom_call.1} parent=1 // pred_region
      _
    $region13: #{tpu_custom_call.1} parent=1 // pred_fallthru
      _
    // Predicated region
    $region14: #{tpu_custom_call.1} parent=1 // pred_check
      _
    $region15: #{tpu_custom_call.1} parent=1 // pred_check_branch
      %32 = sbr.rel (0) target = $region17
    $region16: #{tpu_custom_call.1} parent=1 // pred_region
      %s34 = ssub.s32 256, 256
      %35 = vsyncadd [#allocation6], %s34
      %s36 = sshll.u32 [#allocation5], 4
      %s37 = int_to_ptr.vmem [resolvable:$true] %s36
      %42 = dma.hbm_to_vmem [thread:$0]  %s3, 256, %s37, [#allocation6], 64, 64, 4
    $region17: #{tpu_custom_call.1} parent=1 // pred_fallthru
      _
    // Predicated region
    $region18: #{tpu_custom_call.1} parent=1 // pred_check
      _
    $region19: #{tpu_custom_call.1} parent=1 // pred_check_branch
      %44 = sbr.rel (0) target = $region21
    $region20: #{tpu_custom_call.1} parent=1 // pred_region
      %s46 = ssub.s32 16, 16
      %47 = vsyncadd [#allocation6], %s46
      %s49 = sshll.u32 [#allocation7], 4
      %s50 = int_to_ptr.vmem [resolvable:$true] %s49
      %52 = dma.hbm_to_vmem [thread:$0]  %s4, 16, %s50, [#allocation6]
    $region21: #{tpu_custom_call.1} parent=1 // pred_fallthru
      _
    // Predicated region
    $region22: #{tpu_custom_call.1} parent=1 // pred_check
      _
    $region23: #{tpu_custom_call.1} parent=1 // pred_check_branch
      %54 = sbr.rel (0) target = $region25
    $region24: #{tpu_custom_call.1} parent=1 // pred_region
      _
    $region25: #{tpu_custom_call.1} parent=1 // pred_fallthru
      _
    // Predicated region
    $region26: #{tpu_custom_call.1} parent=1 // pred_check
      _
    $region27: #{tpu_custom_call.1} parent=1 // pred_check_branch
      %56 = sbr.rel (0) target = $region29
    $region28: #{tpu_custom_call.1} parent=1 // pred_region
      _
    $region29: #{tpu_custom_call.1} parent=1 // pred_fallthru
      _
    // Predicated region
    $region30: #{tpu_custom_call.1} parent=1 // pred_check
      _
    $region31: #{tpu_custom_call.1} parent=1 // pred_check_branch
      %58 = sbr.rel (0) target = $region33
    $region32: #{tpu_custom_call.1} parent=1 // pred_region
      %59 = dma.done [#allocation3], 128
    $region33: #{tpu_custom_call.1} parent=1 // pred_fallthru
      _
    // Predicated region
    $region34: #{tpu_custom_call.1} parent=1 // pred_check
      _
    $region35: #{tpu_custom_call.1} parent=1 // pred_check_branch
      %61 = sbr.rel (0) target = $region37
    $region36: #{tpu_custom_call.1} parent=1 // pred_region
      %62 = dma.done [#allocation6], 256
    $region37: #{tpu_custom_call.1} parent=1 // pred_fallthru
      _
    // Predicated region
    $region38: #{tpu_custom_call.1} parent=1 // pred_check
      _
    $region39: #{tpu_custom_call.1} parent=1 // pred_check_branch
      %64 = sbr.rel (0) target = $region41
    $region40: #{tpu_custom_call.1} parent=1 // pred_region
      %65 = dma.done [#allocation6], 16
    $region41: #{tpu_custom_call.1} parent=1 // pred_fallthru
      _
    %v67 = vld [vmem:[%s0] sm:$0xf]
    %v68 = vld [vmem:[%s0 + $0x4] sm:$0xf]
    %v69 = vld [vmem:[%s0 + $0x8] sm:$0xf]
    %v70 = vld [vmem:[%s0 + $0xc] sm:$0xf]
    %v71 = vld [vmem:[#allocation2] sm:$0xf]
    %v72 = vld [vmem:[#allocation2 + $0x4] sm:$0xf]
    %v73 = vld [vmem:[%s2] sm:$0x1]
    %v75 = vlaneseq
    %v76 = vshrl.u32 %v75, 7
    %v77 = vsub.s32 0, %v76
    %v78 = vrot.slane %v73, %v77
    %v84 = vunpack.c.l.b16 %v67
    %v85 = vunpack.c.l.b16 %v68
    %v86 = vunpack.c.l.b16 %v69
    %v87 = vunpack.c.l.b16 %v70
    %v88 = vpack.c.b16 %v85, %v84
    %v89 = vpack.c.b16 %v87, %v86
    %v92 = vunpack.c.l.b16 %v71
    %v93 = vunpack.c.l.b16 %v72
    %v94 = vpack.c.b16 %v93, %v92
    %vm96 = vcmask 130048
    %v98 = vsel %vm96, %v88, 0
    %v101 = vsel %vm96, %v89, 0
    %103 = vmatprep.subr.bf16.mxu0 0
    %104 = vmatpush1.bf16.msra.mxu0 0
    %105 = vmatprep.subr.bf16.mxu0 0
    %106 = vmatpush1.bf16.msra.mxu0 0
    %107 = vmatprep.subr.bf16.mxu0 0
    %108 = vmatpush1.bf16.msra.mxu0 0
    %109 = vmatprep.subr.bf16.mxu0 0
    %110 = vmatpush1.bf16.msra.mxu0 0
    %111 = vmatprep.subr.bf16.mxu0 0
    %112 = vmatpush1.bf16.msra.mxu0 0
    %113 = vmatprep.subr.bf16.mxu0 0
    %114 = vmatpush1.bf16.msra.mxu0 0
    %115 = vmatprep.subr.bf16.mxu0 0
    %116 = vmatpush1.bf16.msra.mxu0 0
    %117 = vmatprep.subr.bf16.mxu0 0
    %118 = vmatpush1.bf16.msra.mxu0 %v94
    %119 = vmatprep.subr.bf16.mxu0 0
    %120 = vmatpush2.bf16.msra.mxu0 0
    %121 = vmatprep.subr.bf16.mxu0 0
    %122 = vmatpush2.bf16.msra.mxu0 0
    %123 = vmatprep.subr.bf16.mxu0 0
    %124 = vmatpush2.bf16.msra.mxu0 0
    %125 = vmatprep.subr.bf16.mxu0 0
    %126 = vmatpush2.bf16.msra.mxu0 0
    %127 = vmatprep.subr.bf16.mxu0 0
    %128 = vmatpush2.bf16.msra.mxu0 0
    %129 = vmatprep.subr.bf16.mxu0 0
    %130 = vmatpush2.bf16.msra.mxu0 0
    %131 = vmatprep.subr.bf16.mxu0 0
    %132 = vmatpush2.bf16.msra.mxu0 0
    %133 = vmatprep.subr.bf16.mxu0 0
    %134 = vmatpush2.bf16.msra.mxu0 0
    %135 = vmatprep.mubr.bf16.mxu0 0
    %136 = vmatmul.mubr.bf16.gmra.mxu0 %v98
    %v137 = vpop.f32.mrf.mxu0
    %v138 = vadd.f32 %v78, %v137
    %v139 = vpop.f32.mrf.mxu0
    %v140 = vpop.f32.mrf.mxu0
    %v141 = vadd.f32 %v78, %v140
    %v142 = vpop.f32.mrf.mxu0
    %143 = vmatprep.mubr.bf16.mxu0 0
    %144 = vmatmul.mubr.bf16.gmra.mxu0 %v101
    %v145 = vpop.f32.mrf.mxu0
    %v146 = vadd.f32 %v78, %v145
    %v147 = vpop.f32.mrf.mxu0
    %v148 = vpop.f32.mrf.mxu0
    %v149 = vadd.f32 %v78, %v148
    %v150 = vpop.f32.mrf.mxu0
    %151 = vdwg.mxu0
    %v152 = vmax.f32 %v138, 0.0
    %v153 = vmax.f32 %v141, 0.0
    %v154 = vmax.f32 %v146, 0.0
    %v155 = vmax.f32 %v149, 0.0
    %v156 = vpack.c.bf16 %v153, %v152
    %v157 = vpack.c.bf16 %v155, %v154
    %v158 = vld [vmem:[#allocation5] sm:$0xf]
    %v159 = vld [vmem:[#allocation5 + $0x4] sm:$0xf]
    %v160 = vld [vmem:[#allocation5 + $0x8] sm:$0xf]
    %v161 = vld [vmem:[#allocation5 + $0xc] sm:$0xf]
    %v162 = vld [vmem:[#allocation7] sm:$0x1]
    %v164 = vlaneseq
    %v165 = vshrl.u32 %v164, 7
    %v166 = vsub.s32 0, %v165
    %v167 = vrot.slane %v162, %v166
    %v173 = vunpack.c.l.b16 %v158
    %v174 = vunpack.c.l.b16 %v159
    %v175 = vunpack.c.l.b16 %v160
    %v176 = vunpack.c.l.b16 %v161
    %v177 = vpack.c.b16 %v174, %v173
    %v178 = vpack.c.b16 %v176, %v175
    %vm181 = vcmask 261120
    %v183 = vsel %vm181, %v156, 0
    %v186 = vsel %vm181, %v157, 0
    %188 = vmatprep.subr.bf16.mxu0 0
    %189 = vmatpush1.bf16.msra.mxu0 0
    %190 = vmatprep.subr.bf16.mxu0 0
    %191 = vmatpush1.bf16.msra.mxu0 0
    %192 = vmatprep.subr.bf16.mxu0 0
    %193 = vmatpush1.bf16.msra.mxu0 0
    %194 = vmatprep.subr.bf16.mxu0 0
    %195 = vmatpush1.bf16.msra.mxu0 0
    %196 = vmatprep.subr.bf16.mxu0 0
    %197 = vmatpush1.bf16.msra.mxu0 0
    %198 = vmatprep.subr.bf16.mxu0 0
    %199 = vmatpush1.bf16.msra.mxu0 0
    %200 = vmatprep.subr.bf16.mxu0 0
    %201 = vmatpush1.bf16.msra.mxu0 %v178
    %202 = vmatprep.subr.bf16.mxu0 0
    %203 = vmatpush1.bf16.msra.mxu0 %v177
    %204 = vmatprep.subr.bf16.mxu0 0
    %205 = vmatpush2.bf16.msra.mxu0 0
    %206 = vmatprep.subr.bf16.mxu0 0
    %207 = vmatpush2.bf16.msra.mxu0 0
    %208 = vmatprep.subr.bf16.mxu0 0
    %209 = vmatpush2.bf16.msra.mxu0 0
    %210 = vmatprep.subr.bf16.mxu0 0
    %211 = vmatpush2.bf16.msra.mxu0 0
    %212 = vmatprep.subr.bf16.mxu0 0
    %213 = vmatpush2.bf16.msra.mxu0 0
    %214 = vmatprep.subr.bf16.mxu0 0
    %215 = vmatpush2.bf16.msra.mxu0 0
    %216 = vmatprep.subr.bf16.mxu0 0
    %217 = vmatpush2.bf16.msra.mxu0 0
    %218 = vmatprep.subr.bf16.mxu0 0
    %219 = vmatpush2.bf16.msra.mxu0 0
    %220 = vmatprep.mubr.bf16.mxu0 0
    %221 = vmatmul.mubr.bf16.gmra.mxu0 %v183
    %v222 = vpop.f32.mrf.mxu0
    %v223 = vadd.f32 %v167, %v222
    %v224 = vpop.f32.mrf.mxu0
    %v225 = vpop.f32.mrf.mxu0
    %v226 = vadd.f32 %v167, %v225
    %v227 = vpop.f32.mrf.mxu0
    %228 = vmatprep.mubr.bf16.mxu0 0
    %229 = vmatmul.mubr.bf16.gmra.mxu0 %v186
    %v230 = vpop.f32.mrf.mxu0
    %v231 = vadd.f32 %v167, %v230
    %v232 = vpop.f32.mrf.mxu0
    %v233 = vpop.f32.mrf.mxu0
    %v234 = vadd.f32 %v167, %v233
    %v235 = vpop.f32.mrf.mxu0
    %236 = vdwg.mxu0
    %v237 = vmax.f32 %v223, 0.0
    %v238 = vmax.f32 %v226, 0.0
    %v239 = vmax.f32 %v231, 0.0
    %v240 = vmax.f32 %v234, 0.0
    %v241 = vpack.c.bf16 %v238, %v237
    %v242 = vpack.c.bf16 %v240, %v239
    %v243 = vld [vmem:[%s5] sm:$0xf]
    %v244 = vld [vmem:[%s5 + $0x4] sm:$0xf]
    %v245 = vld [vmem:[%s5 + $0x8] sm:$0xf]
    %v246 = vld [vmem:[%s5 + $0xc] sm:$0xf]
    %v247 = vld [vmem:[%s5 + $0x10] sm:$0xf]
    %v248 = vld [vmem:[%s5 + $0x14] sm:$0xf]
    %v249 = vld [vmem:[%s5 + $0x18] sm:$0xf]
    %v250 = vld [vmem:[%s5 + $0x1c] sm:$0xf]
    %v251 = vld [vmem:[%s6] sm:$0x1]
    %v253 = vlaneseq
    %v254 = vshrl.u32 %v253, 7
    %v255 = vsub.s32 0, %v254
    %v256 = vrot.slane %v251, %v255
    %v266 = vunpack.c.l.b16 %v243
    %v267 = vunpack.c.l.b16 %v244
    %v268 = vunpack.c.l.b16 %v245
    %v269 = vunpack.c.l.b16 %v246
    %v270 = vunpack.c.l.b16 %v247
    %v271 = vunpack.c.l.b16 %v248
    %v272 = vunpack.c.l.b16 %v249
    %v273 = vunpack.c.l.b16 %v250
    %v274 = vpack.c.b16 %v267, %v266
    %v275 = vpack.c.b16 %v269, %v268
    %v276 = vpack.c.b16 %v271, %v270
    %v277 = vpack.c.b16 %v273, %v272
    %vm282 = vcmask 523264
    %v284 = vsel %vm282, %v241, 0
    %v287 = vsel %vm282, %v242, 0
    %289 = vmatprep.subr.bf16.mxu0 0
    %290 = vmatpush1.bf16.msra.mxu0 0
    %291 = vmatprep.subr.bf16.mxu0 0
    %292 = vmatpush1.bf16.msra.mxu0 0
    %293 = vmatprep.subr.bf16.mxu0 0
    %294 = vmatpush1.bf16.msra.mxu0 0
    %295 = vmatprep.subr.bf16.mxu0 0
    %296 = vmatpush1.bf16.msra.mxu0 0
    %297 = vmatprep.subr.bf16.mxu0 0
    %298 = vmatpush1.bf16.msra.mxu0 %v277
    %299 = vmatprep.subr.bf16.mxu0 0
    %300 = vmatpush1.bf16.msra.mxu0 %v276
    %301 = vmatprep.subr.bf16.mxu0 0
    %302 = vmatpush1.bf16.msra.mxu0 %v275
    %303 = vmatprep.subr.bf16.mxu0 0
    %304 = vmatpush1.bf16.msra.mxu0 %v274
    %305 = vmatprep.subr.bf16.mxu0 0
    %306 = vmatpush2.bf16.msra.mxu0 0
    %307 = vmatprep.subr.bf16.mxu0 0
    %308 = vmatpush2.bf16.msra.mxu0 0
    %309 = vmatprep.subr.bf16.mxu0 0
    %310 = vmatpush2.bf16.msra.mxu0 0
    %311 = vmatprep.subr.bf16.mxu0 0
    %312 = vmatpush2.bf16.msra.mxu0 0
    %313 = vmatprep.subr.bf16.mxu0 0
    %314 = vmatpush2.bf16.msra.mxu0 0
    %315 = vmatprep.subr.bf16.mxu0 0
    %316 = vmatpush2.bf16.msra.mxu0 0
    %317 = vmatprep.subr.bf16.mxu0 0
    %318 = vmatpush2.bf16.msra.mxu0 0
    %319 = vmatprep.subr.bf16.mxu0 0
    %320 = vmatpush2.bf16.msra.mxu0 0
    %321 = vmatprep.mubr.bf16.mxu0 0
    %322 = vmatmul.mubr.bf16.gmra.mxu0 %v284
    %v323 = vpop.f32.mrf.mxu0
    %v324 = vadd.f32 %v256, %v323
    %v325 = vpop.f32.mrf.mxu0
    %v326 = vpop.f32.mrf.mxu0
    %v327 = vadd.f32 %v256, %v326
    %v328 = vpop.f32.mrf.mxu0
    %329 = vmatprep.mubr.bf16.mxu0 0
    %330 = vmatmul.mubr.bf16.gmra.mxu0 %v287
    %v331 = vpop.f32.mrf.mxu0
    %v332 = vadd.f32 %v256, %v331
    %v333 = vpop.f32.mrf.mxu0
    %v334 = vpop.f32.mrf.mxu0
    %v335 = vadd.f32 %v256, %v334
    %v336 = vpop.f32.mrf.mxu0
    %337 = vdwg.mxu0
    %v338 = vmul.f32 %v324, 0.5
    %v339 = vmul.f32 %v327, 0.5
    %v340 = vmul.f32 %v332, 0.5
    %v341 = vmul.f32 %v335, 0.5
    %v342 = vtanh.pop %v338
    %v343 = vtanh.pop %v339
    %v344 = vtanh.pop %v340
    %v345 = vtanh.pop %v341
    %v346 = vmul.f32 %v342, 0.5
    %v347 = vmul.f32 %v343, 0.5
    %v348 = vmul.f32 %v344, 0.5
    %v349 = vmul.f32 %v345, 0.5
    %v350 = vadd.f32 %v346, 0.5
    %v351 = vadd.f32 %v347, 0.5
    %v352 = vadd.f32 %v348, 0.5
    %v353 = vadd.f32 %v349, 0.5
    %354 = vst [vmem:[#allocation8] sm:$0xff] %v350
    %355 = vst [vmem:[#allocation8 + $0x8] sm:$0xff] %v351
    %356 = vst [vmem:[#allocation8 + $0x10] sm:$0xff] %v352
    %357 = vst [vmem:[#allocation8 + $0x18] sm:$0xff] %v353
    // Predicated region
    $region42: #{tpu_custom_call.1} parent=1 // pred_check
      _
    $region43: #{tpu_custom_call.1} parent=1 // pred_check_branch
      %359 = sbr.rel (0) target = $region45
    $region44: #{tpu_custom_call.1} parent=1 // pred_region
      %s361 = ssub.s32 512, 512
      %362 = vsyncadd [#allocation4], %s361
      %s363 = sshll.u32 [#allocation8], 4
      %s364 = int_to_ptr.vmem [resolvable:$true] %s363
      %369 = dma.vmem_to_hbm [thread:$0]  %s364, 512, %s7, [#allocation4], 128, 128, 8
    $region45: #{tpu_custom_call.1} parent=1 // pred_fallthru
      _
    // Predicated region
    $region46: #{tpu_custom_call.1} parent=1 // pred_check
      _
    $region47: #{tpu_custom_call.1} parent=1 // pred_check_branch
      %371 = sbr.rel (0) target = $region49
    $region48: #{tpu_custom_call.1} parent=1 // pred_region
      %372 = dma.done [#allocation4], 512
    $region49: #{tpu_custom_call.1} parent=1 // pred_fallthru
      _
    %373 = vsyncpa [#allocation3], 1
    %374 = vsyncpa [#allocation6], 1
    %375 = vsyncpa [#allocation4], 1

</llo_original>
